<compile_context>
chip_gen: v7x
topology: tpu7x:2x2x1
jax: 0.10.0
libtpu: 0.0.40
codegen_flags: <defaults>
</compile_context>

<pallas_src>
import jax
import jax.numpy as jnp
from jax.experimental import pallas as pl
from jax.experimental.pallas import tpu as pltpu


LANE = 128
MAX_TILE_ROWS = 2048   # 2048 x 128 f32 = 1 MiB per input block per grid step
NUM_CORES = 2          # leading "parallel" axis (used by v7x's 2 TensorCores)


def _make_dice_kernel(rows, tile_rows, blocks_per_core, needs_mask):
    """Builds the per-call kernel (closes over static tiling parameters)."""

    def kernel(x_ref, t_ref, acc_ref):
        c = pl.program_id(0)   # core-parallel axis
        i = pl.program_id(1)   # reduction axis (accumulator resident)

        @pl.when(i == 0)
        def _init():
            acc_ref[...] = jnp.zeros_like(acc_ref)

        x = x_ref[...].astype(jnp.float32)
        t = t_ref[...].astype(jnp.float32)
        p = jax.nn.sigmoid(x)

        if needs_mask:
            # Mask out rows past the end of the array (ragged last block, or a
            # fully-out-of-range block assigned to a core when the block count
            # doesn't split evenly).
            row0 = (c * blocks_per_core + i) * tile_rows
            rid = jax.lax.broadcasted_iota(jnp.int32, p.shape, 0) + row0
            valid = rid < rows
            p = jnp.where(valid, p, 0.0)
            t = jnp.where(valid, t, 0.0)

        # Lane-parallel partial sums (pure VPU adds; hidden under the DMA).
        acc_ref[0:1, :] += jnp.sum(p * t, axis=0, keepdims=True)
        acc_ref[1:2, :] += jnp.sum(p, axis=0, keepdims=True)
        acc_ref[2:3, :] += jnp.sum(t, axis=0, keepdims=True)

    return kernel


def _dice_sums_pallas(x2, t2, rows, tile_rows, num_cores, blocks_per_core,
                      n_blocks):
    """Returns (8,) f32 vector; entries 0..2 = [sum(p*t), sum(p), sum(t)]."""
    needs_clamp = num_cores * blocks_per_core != n_blocks
    needs_mask = needs_clamp or (rows % tile_rows != 0)

    if needs_clamp:
        def in_map(c, i):
            return (jnp.minimum(c * blocks_per_core + i, n_blocks - 1), 0)
    else:
        def in_map(c, i):
            return (c * blocks_per_core + i, 0)

    kernel = _make_dice_kernel(rows, tile_rows, blocks_per_core, needs_mask)

    partials = pl.pallas_call(
        kernel,
        out_shape=jax.ShapeDtypeStruct((num_cores, 8, LANE), jnp.float32),
        grid_spec=pltpu.PrefetchScalarGridSpec(
            num_scalar_prefetch=0,
            grid=(num_cores, blocks_per_core),
            in_specs=[
                pl.BlockSpec((tile_rows, LANE), in_map),
                pl.BlockSpec((tile_rows, LANE), in_map),
            ],
            # Per-core (8, 128) accumulator, resident across the reduction axis.
            out_specs=pl.BlockSpec((None, 8, LANE), lambda c, i: (c, 0, 0)),
        ),
        compiler_params=pltpu.CompilerParams(
            dimension_semantics=("parallel", "arbitrary"),
        ),
    )(x2, t2)

    # Single cross-lane/cross-core reduction, done once in the epilogue.
    return jnp.sum(partials, axis=(0, 2))


def dice_loss(inputs, targets, smooth=1.0):
    """Pallas-backed DiceLoss.forward(inputs, targets, smooth)."""
    x = inputs.reshape(-1)   # keep native dtype (bf16/f32/int); cast in-kernel
    t = targets.reshape(-1)
    n = x.shape[0]

    n_main = (n // LANE) * LANE
    rows = n_main // LANE

    inter = jnp.float32(0.0)
    psum = jnp.float32(0.0)
    tsum = jnp.float32(0.0)

    if rows > 0:
        tile_rows = MAX_TILE_ROWS if rows >= MAX_TILE_ROWS else rows
        n_blocks = pl.cdiv(rows, tile_rows)
        num_cores = NUM_CORES if n_blocks >= NUM_CORES else 1
        blocks_per_core = pl.cdiv(n_blocks, num_cores)

        x_main = x if n_main == n else x[:n_main]
        t_main = t if n_main == n else t[:n_main]
        x2 = x_main.reshape(rows, LANE)   # free reshape when n % 128 == 0
        t2 = t_main.reshape(rows, LANE)

        sums = _dice_sums_pallas(x2, t2, rows, tile_rows, num_cores,
                                 blocks_per_core, n_blocks)
        inter = inter + sums[0]
        psum = psum + sums[1]
        tsum = tsum + sums[2]

    if n_main < n:
        # Tiny (<128-element) ragged tail: plain JAX, negligible cost.
        xt = x[n_main:].astype(jnp.float32)
        tt = t[n_main:].astype(jnp.float32)
        pt = jax.nn.sigmoid(xt)
        inter = inter + jnp.sum(pt * tt)
        psum = psum + jnp.sum(pt)
        tsum = tsum + jnp.sum(tt)

    dice = (2.0 * inter + smooth) / (psum + tsum + smooth)
    return 1.0 - dice


def _dice_loss_ref(inputs, targets, smooth=1.0):
    p = jax.nn.sigmoid(inputs.reshape(-1).astype(jnp.float32))
    t = targets.reshape(-1).astype(jnp.float32)
    inter = jnp.sum(p * t)
    dice = (2.0 * inter + smooth) / (jnp.sum(p) + jnp.sum(t) + smooth)
    return 1.0 - dice


if __name__ == "__main__":
    key = jax.random.PRNGKey(0)
    k1, k2 = jax.random.split(key)

    # Logits (e.g. UNet output, NCHW) and binary segmentation targets.
    x = jax.random.normal(k1, (2, 4, 16, 16), dtype=jnp.float32)
    tgt = (jax.random.uniform(k2, (2, 4, 16, 16)) > 0.5).astype(jnp.float32)

    loss = jax.block_until_ready(dice_loss(x, tgt, smooth=1.0))
    ref = jax.block_until_ready(_dice_loss_ref(x, tgt, smooth=1.0))

    assert jnp.allclose(loss, ref, atol=1e-5, rtol=1e-5), (loss, ref)
    print("KERNEL_OK")
</pallas_src>

<mosaic_0001>
module attributes {stable_mosaic.version = 11 : i64} {
  func.func @kernel(%arg0: i32, %arg1: i32, %arg2: memref<16x128xf32, #tpu.memory_space<vmem>>, %arg3: memref<16x128xf32, #tpu.memory_space<vmem>>, %arg4: memref<1x8x128xf32, #tpu.memory_space<vmem>>) attributes {dimension_semantics = [#tpu.dimension_semantics<parallel>, #tpu.dimension_semantics<arbitrary>], iteration_bounds = array<i64: 1, 1>, scalar_prefetch = 0 : i64, scratch_operands = 0 : i64, tpu.core_type = #tpu.core_type<tc>, window_params = [{transform_indices = @transform_0, window_bounds = array<i64: 16, 128>}, {transform_indices = @transform_1, window_bounds = array<i64: 16, 128>}, {transform_indices = @transform_2, window_bounds = array<i64: 1, 8, 128>}]} {
    %c0_i32 = arith.constant 0 : i32
    %0 = arith.cmpi eq, %arg1, %c0_i32 : i32
    %1 = arith.extui %0 : i1 to i32
    %c0_i32_0 = arith.constant 0 : i32
    %2 = arith.cmpi ne, %1, %c0_i32_0 : i32
    scf.if %2 {
      %cst_23 = arith.constant 0.000000e+00 : f32
      %35 = vector.broadcast %cst_23 : f32 to vector<8x128xf32>
      %c0_24 = arith.constant 0 : index
      %c0_25 = arith.constant 0 : index
      %c0_26 = arith.constant 0 : index
      %36 = vector.load %arg4[%c0_24, %c0_25, %c0_26] : memref<1x8x128xf32, #tpu.memory_space<vmem>>, vector<1x8x128xf32>
      %37 = vector.shape_cast %36 : vector<1x8x128xf32> to vector<8x128xf32>
      %38 = vector.shape_cast %35 : vector<8x128xf32> to vector<1x8x128xf32>
      tpu.vector_store %arg4[%c0_24, %c0_25, %c0_26], %38 {strides = array<i32>} : memref<1x8x128xf32, #tpu.memory_space<vmem>>, vector<1x8x128xf32>,
    } else {
    }
    %c0 = arith.constant 0 : index
    %c0_1 = arith.constant 0 : index
    %3 = vector.load %arg2[%c0, %c0_1] : memref<16x128xf32, #tpu.memory_space<vmem>>, vector<16x128xf32>
    %c0_2 = arith.constant 0 : index
    %c0_3 = arith.constant 0 : index
    %4 = vector.load %arg3[%c0_2, %c0_3] : memref<16x128xf32, #tpu.memory_space<vmem>>, vector<16x128xf32>
    %5 = arith.negf %3 : vector<16x128xf32>
    %6 = math.exp %5 : vector<16x128xf32>
    %cst = arith.constant 1.000000e+00 : f32
    %7 = vector.broadcast %cst : f32 to vector<16x128xf32>
    %8 = arith.addf %7, %6 : vector<16x128xf32>
    %9 = arith.divf %7, %8 : vector<16x128xf32>
    %c0_4 = arith.constant 0 : index
    %c0_5 = arith.constant 0 : index
    %c0_6 = arith.constant 0 : index
    %10 = vector.load %arg4[%c0_4, %c0_5, %c0_6] : memref<1x8x128xf32, #tpu.memory_space<vmem>>, vector<1x1x128xf32>
    %11 = vector.shape_cast %10 : vector<1x1x128xf32> to vector<1x128xf32>
    %12 = arith.mulf %9, %4 : vector<16x128xf32>
    %cst_7 = arith.constant dense<0.000000e+00> : vector<128xf32>
    %13 = vector.multi_reduction <add>, %12, %cst_7 [0] : vector<16x128xf32> to vector<128xf32>
    %14 = vector.shape_cast %13 : vector<128xf32> to vector<1x128xf32>
    %15 = arith.addf %11, %14 : vector<1x128xf32>
    %c0_8 = arith.constant 0 : index
    %c0_9 = arith.constant 0 : index
    %c0_10 = arith.constant 0 : index
    %16 = vector.load %arg4[%c0_8, %c0_9, %c0_10] : memref<1x8x128xf32, #tpu.memory_space<vmem>>, vector<1x1x128xf32>
    %17 = vector.shape_cast %16 : vector<1x1x128xf32> to vector<1x128xf32>
    %18 = vector.shape_cast %15 : vector<1x128xf32> to vector<1x1x128xf32>
    tpu.vector_store %arg4[%c0_8, %c0_9, %c0_10], %18 {strides = array<i32>} : memref<1x8x128xf32, #tpu.memory_space<vmem>>, vector<1x1x128xf32>,
    %c0_11 = arith.constant 0 : index
    %c1 = arith.constant 1 : index
    %c0_12 = arith.constant 0 : index
    %19 = vector.load %arg4[%c0_11, %c1, %c0_12] : memref<1x8x128xf32, #tpu.memory_space<vmem>>, vector<1x1x128xf32>
    %20 = vector.shape_cast %19 : vector<1x1x128xf32> to vector<1x128xf32>
    %cst_13 = arith.constant dense<0.000000e+00> : vector<128xf32>
    %21 = vector.multi_reduction <add>, %9, %cst_13 [0] : vector<16x128xf32> to vector<128xf32>
    %22 = vector.shape_cast %21 : vector<128xf32> to vector<1x128xf32>
    %23 = arith.addf %20, %22 : vector<1x128xf32>
    %c0_14 = arith.constant 0 : index
    %c1_15 = arith.constant 1 : index
    %c0_16 = arith.constant 0 : index
    %24 = vector.load %arg4[%c0_14, %c1_15, %c0_16] : memref<1x8x128xf32, #tpu.memory_space<vmem>>, vector<1x1x128xf32>
    %25 = vector.shape_cast %24 : vector<1x1x128xf32> to vector<1x128xf32>
    %26 = vector.shape_cast %23 : vector<1x128xf32> to vector<1x1x128xf32>
    tpu.vector_store %arg4[%c0_14, %c1_15, %c0_16], %26 {strides = array<i32>} : memref<1x8x128xf32, #tpu.memory_space<vmem>>, vector<1x1x128xf32>,
    %c0_17 = arith.constant 0 : index
    %c2 = arith.constant 2 : index
    %c0_18 = arith.constant 0 : index
    %27 = vector.load %arg4[%c0_17, %c2, %c0_18] : memref<1x8x128xf32, #tpu.memory_space<vmem>>, vector<1x1x128xf32>
    %28 = vector.shape_cast %27 : vector<1x1x128xf32> to vector<1x128xf32>
    %cst_19 = arith.constant dense<0.000000e+00> : vector<128xf32>
    %29 = vector.multi_reduction <add>, %4, %cst_19 [0] : vector<16x128xf32> to vector<128xf32>
    %30 = vector.shape_cast %29 : vector<128xf32> to vector<1x128xf32>
    %31 = arith.addf %28, %30 : vector<1x128xf32>
    %c0_20 = arith.constant 0 : index
    %c2_21 = arith.constant 2 : index
    %c0_22 = arith.constant 0 : index
    %32 = vector.load %arg4[%c0_20, %c2_21, %c0_22] : memref<1x8x128xf32, #tpu.memory_space<vmem>>, vector<1x1x128xf32>
    %33 = vector.shape_cast %32 : vector<1x1x128xf32> to vector<1x128xf32>
    %34 = vector.shape_cast %31 : vector<1x128xf32> to vector<1x1x128xf32>
    tpu.vector_store %arg4[%c0_20, %c2_21, %c0_22], %34 {strides = array<i32>} : memref<1x8x128xf32, #tpu.memory_space<vmem>>, vector<1x1x128xf32>,
    return
  }
  func.func @transform_0(%arg0: i32, %arg1: i32) -> (i32, i32) {
    %c1_i32 = arith.constant 1 : i32
    %0 = arith.muli %arg0, %c1_i32 : i32
    %1 = arith.addi %0, %arg1 : i32
    %c0_i32 = arith.constant 0 : i32
    %c0_i32_0 = arith.constant 0 : i32
    return %1, %c0_i32 : i32, i32
  }
  func.func @transform_1(%arg0: i32, %arg1: i32) -> (i32, i32) {
    %c1_i32 = arith.constant 1 : i32
    %0 = arith.muli %arg0, %c1_i32 : i32
    %1 = arith.addi %0, %arg1 : i32
    %c0_i32 = arith.constant 0 : i32
    %c0_i32_0 = arith.constant 0 : i32
    return %1, %c0_i32 : i32, i32
  }
  func.func @transform_2(%arg0: i32, %arg1: i32) -> (i32, i32, i32) {
    %c0_i32 = arith.constant 0 : i32
    %c0_i32_0 = arith.constant 0 : i32
    %c0_i32_1 = arith.constant 0 : i32
    return %arg0, %c0_i32, %c0_i32_0 : i32, i32, i32
  }
}

</mosaic_0001>

<llo_original>
// kernel: tpu_custom_call.1
$region0: #{tpu_custom_call.1}
  #allocation0 [shape = 'u32[]', space=smem, size = 0x4, offset = 0x4, fixed_abs, tag = 'smem constant byte address 0x4 - core index']
  #allocation1 [shape = 'u32[144,128]{1,0:T(1,128)}', space=vmem, size = 0x12000, scoped, tag = 'internal scratch']
  %s0 = inlined_call_operand.hbm [shape: f32[16,128], index: 0, kind: input, shape index: {}]
  %s1 = inlined_call_operand.hbm [shape: f32[16,128], index: 1, kind: input, shape index: {}]
  %s2 = inlined_call_operand.hbm [shape: f32[1,8,128], index: 2, kind: output, shape index: {}]
  %s3 = sld [smem:[#allocation0]]
  $region30: #{tpu_custom_call.1} parent=0
    _
  %s5 = ssub.s32 1, %s3
  %s6 = scalar_select 0, %s5, %s3
  $region1: #{tpu_custom_call.1} parent=0
    #allocation2 [shape = 'u8[8192]{0}', space=vmem, size = 0x2000, scoped, tag = 'input window, operand 0, single buffered']
    #allocation3 [shape = 's32[1]{0}', space=sflag, size = 0x4, scoped, tag = 'scoped memory for tpu_custom_call.1']
    #allocation4 [shape = 's32[1]{0}', space=sflag, size = 0x4, scoped, tag = 'scoped memory for tpu_custom_call.1']
    #allocation5 [shape = 'u8[8192]{0}', space=vmem, size = 0x2000, scoped, tag = 'input window, operand 1, single buffered']
    #allocation6 [shape = 's32[1]{0}', space=sflag, size = 0x4, scoped, tag = 'scoped memory for tpu_custom_call.1']
    #allocation7 [shape = 'u8[4096]{0}', space=vmem, size = 0x1000, scoped, tag = 'output window, operand 0, single buffered']
    %7 = vsyncpa [#allocation3], 0
    %8 = vsyncpa [#allocation6], 0
    %9 = vsyncpa [#allocation4], 0
    // Predicated region
    $region2: #{tpu_custom_call.1} parent=1 // pred_check
      _
    $region3: #{tpu_custom_call.1} parent=1 // pred_check_branch
      %11 = sbr.rel (0) target = $region5
    $region4: #{tpu_custom_call.1} parent=1 // pred_region
      %s12 = sadd.s32 0, 0
      %s13 = smul.u32 2, %s12
      %s15 = ssub.s32 256, 256
      %16 = vsyncadd [#allocation3], %s15
      %s17 = smul.addr %s13, 128
      %s18 = scalar_lea.hbm %s0, %s17
      %s19 = sshll.u32 [#allocation2], 4
      %s20 = int_to_ptr.vmem [resolvable:$true] %s19
      %25 = dma.hbm_to_vmem [thread:$0]  %s18, 256, %s20, [#allocation3], 128, 128, 8
    $region5: #{tpu_custom_call.1} parent=1 // pred_fallthru
      _
    // Predicated region
    $region6: #{tpu_custom_call.1} parent=1 // pred_check
      _
    $region7: #{tpu_custom_call.1} parent=1 // pred_check_branch
      %27 = sbr.rel (0) target = $region9
    $region8: #{tpu_custom_call.1} parent=1 // pred_region
      %s28 = sadd.s32 0, 0
      %s29 = smul.u32 2, %s28
      %s31 = ssub.s32 256, 256
      %32 = vsyncadd [#allocation6], %s31
      %s33 = smul.addr %s29, 128
      %s34 = scalar_lea.hbm %s1, %s33
      %s35 = sshll.u32 [#allocation5], 4
      %s36 = int_to_ptr.vmem [resolvable:$true] %s35
      %41 = dma.hbm_to_vmem [thread:$0]  %s34, 256, %s36, [#allocation6], 128, 128, 8
    $region9: #{tpu_custom_call.1} parent=1 // pred_fallthru
      _
    // Predicated region
    $region10: #{tpu_custom_call.1} parent=1 // pred_check
      _
    $region11: #{tpu_custom_call.1} parent=1 // pred_check_branch
      %43 = sbr.rel (0) target = $region13
    $region12: #{tpu_custom_call.1} parent=1 // pred_region
      %44 = dma.done [#allocation3], 256
    $region13: #{tpu_custom_call.1} parent=1 // pred_fallthru
      _
    // Predicated region
    $region14: #{tpu_custom_call.1} parent=1 // pred_check
      _
    $region15: #{tpu_custom_call.1} parent=1 // pred_check_branch
      %46 = sbr.rel (0) target = $region17
    $region16: #{tpu_custom_call.1} parent=1 // pred_region
      %47 = dma.done [#allocation6], 256
    $region17: #{tpu_custom_call.1} parent=1 // pred_fallthru
      _
    %s48 = sadd.s32 0, 0
    %s49 = smul.u32 2, %s48
    %s50 = sadd.s32 0, 0
    %s51 = smul.u32 2, %s50
    %p52 = scmp.eq.s32.totalorder 0, 0
    // Predicated region
    $region18: #{tpu_custom_call.1} parent=1 // pred_check
      %p53 = pneg %p52
    $region19: #{tpu_custom_call.1} parent=1 // pred_check_branch
      %55 = sbr.rel (%p53) target = $region21
    $region20: #{tpu_custom_call.1} parent=1 // pred_region
      %56 = vst [vmem:[#allocation7] sm:$0xff] 0.0
    $region21: #{tpu_custom_call.1} parent=1 // pred_fallthru
      _
    %v57 = vld [vmem:[#allocation2] sm:$0xff]
    %v58 = vld [vmem:[#allocation2 + $0x8] sm:$0xff]
    %v59 = vld [vmem:[#allocation5] sm:$0xff]
    %v60 = vld [vmem:[#allocation5 + $0x8] sm:$0xff]
    %v61 = vxor.u32 %v57, 2147483648
    %v62 = vxor.u32 %v58, 2147483648
    %v63 = vmul.f32 %v61, 1.442695
    %v64 = vpow.pop %v63
    %v65 = vmul.f32 %v62, 1.442695
    %v66 = vpow.pop %v65
    %v67 = vadd.f32 %v64, 1.0
    %v68 = vadd.f32 %v66, 1.0
    %v69 = vrcp.pop %v67
    %v70 = vmul.f32 1.0, %v69
    %v71 = vrcp.pop %v68
    %v72 = vmul.f32 1.0, %v71
    %v73 = vld [vmem:[#allocation7] sm:$0x1]
    %v74 = vmul.f32 %v70, %v59
    %v75 = vmul.f32 %v72, %v60
    %v76 = vadd.f32 %v74, %v75
    %v77 = vrot.slane %v76, 4
    %v78 = vadd.f32 %v76, %v77
    %v79 = vrot.slane %v78, 2
    %v80 = vadd.f32 %v78, %v79
    %v81 = vrot.slane %v80, 1
    %v82 = vadd.f32 %v80, %v81
    %v83 = vadd.f32 %v73, %v82
    %84 = vst [vmem:[#allocation7] sm:$0x1] %v83
    %v85 = vld [vmem:[#allocation7 + $0x1] sm:$0x1]
    %v86 = vadd.f32 %v70, %v72
    %v87 = vrot.slane %v86, 4
    %v88 = vadd.f32 %v86, %v87
    %v89 = vrot.slane %v88, 2
    %v90 = vadd.f32 %v88, %v89
    %v91 = vrot.slane %v90, 1
    %v92 = vadd.f32 %v90, %v91
    %v93 = vadd.f32 %v85, %v92
    %94 = vst [vmem:[#allocation7 + $0x1] sm:$0x1] %v93
    %v95 = vld [vmem:[#allocation7 + $0x2] sm:$0x1]
    %v96 = vadd.f32 %v59, %v60
    %v97 = vrot.slane %v96, 4
    %v98 = vadd.f32 %v96, %v97
    %v99 = vrot.slane %v98, 2
    %v100 = vadd.f32 %v98, %v99
    %v101 = vrot.slane %v100, 1
    %v102 = vadd.f32 %v100, %v101
    %v103 = vadd.f32 %v95, %v102
    %104 = vst [vmem:[#allocation7 + $0x2] sm:$0x1] %v103
    // Predicated region
    $region22: #{tpu_custom_call.1} parent=1 // pred_check
      _
    $region23: #{tpu_custom_call.1} parent=1 // pred_check_branch
      %106 = sbr.rel (0) target = $region25
    $region24: #{tpu_custom_call.1} parent=1 // pred_region
      %s108 = ssub.s32 128, 128
      %109 = vsyncadd [#allocation4], %s108
      %s111 = sshll.u32 [#allocation7], 4
      %s112 = int_to_ptr.vmem [resolvable:$true] %s111
      %114 = dma.vmem_to_hbm [thread:$0]  %s112, 128, %s2, [#allocation4]
    $region25: #{tpu_custom_call.1} parent=1 // pred_fallthru
      _
    // Predicated region
    $region26: #{tpu_custom_call.1} parent=1 // pred_check
      _
    $region27: #{tpu_custom_call.1} parent=1 // pred_check_branch
      %116 = sbr.rel (0) target = $region29
    $region28: #{tpu_custom_call.1} parent=1 // pred_region
      %117 = dma.done [#allocation4], 128
    $region29: #{tpu_custom_call.1} parent=1 // pred_fallthru
      _
    %118 = vsyncpa [#allocation3], 1
    %119 = vsyncpa [#allocation6], 1
    %120 = vsyncpa [#allocation4], 1

</llo_original>
